<compile_context>
chip_gen: v5e
topology: v5e:2x2
jax: 0.10.0
libtpu: 0.0.40
codegen_flags: <defaults>
</compile_context>

<pallas_src>
import math

import jax
import jax.numpy as jnp
from jax.experimental import pallas as pl
from jax.experimental.pallas import tpu as pltpu


def _make_kernel(H1, H2):
    def _mlp_kernel(x_ref, w1_ref, w2_ref, w3_ref, b_ref, o_ref):
        # b_ref: (3, H_max) f32 -- row 0 = b1[:H1], row 1 = b2[:H2], row 2[0] = b3.
        b = b_ref[...]

        # Layer 1: (block_b, D) @ (D, H1) -> f32 accumulate on the MXU.
        h1 = jnp.dot(x_ref[...], w1_ref[...], preferred_element_type=jnp.float32)
        h1 = jnp.maximum(h1 + b[0:1, :H1], 0.0)

        # Layer 2: cast activations to the weight dtype (no-op for f32, bf16 fast path).
        h2 = jnp.dot(h1.astype(w2_ref.dtype), w2_ref[...],
                     preferred_element_type=jnp.float32)
        h2 = jnp.maximum(h2 + b[1:2, :H2], 0.0)

        # Output layer: (block_b, H2) @ (H2, 1) + b3.
        out = jnp.dot(h2.astype(w3_ref.dtype), w3_ref[...],
                      preferred_element_type=jnp.float32)
        out = out + b[2:3, 0:1]

        o_ref[...] = out.astype(o_ref.dtype)

    return _mlp_kernel


def _pick_block_b(B, D, itemsize):
    """Batch tile: ~4 MiB per x buffer (8 MiB double-buffered), multiple of 8, <=2048."""
    target = (4 * 1024 * 1024) // max(D * itemsize, 1)
    bb = max(8, min(2048, (target // 8) * 8))
    return B if bb >= B else bb


def _padded_bytes(rows, cols, itemsize):
    """Conservative VMEM footprint of a (rows, cols) tile padded to (8, 128)."""
    return (-(-rows // 8) * 8) * (-(-cols // 128) * 128) * itemsize


def basic_potential_mlp(state, params, *, block_b=None):
    """Forward pass of BasicPotentialMLP.

    state: (B, *obs_shape) array (f32 or bf16).
    params: (w1, b1, w2, b2, w3, b3) with w_i in (in, out) layout, b_i in (1, out).
    Returns: (B,) potential values (squeeze_output=True).
    """
    w1, b1, w2, b2, w3, b3 = params
    B = state.shape[0]
    x = state.reshape(B, -1)                       # flatten_input=True
    D = x.shape[1]
    H1, H2 = w1.shape[1], w2.shape[1]
    assert w1.shape[0] == D and w2.shape[0] == H1 and w3.shape == (H2, 1)

    # --- batch tile selection (multiple of 8 or == B, per the (8,128) rule) ---
    if block_b is None:
        block_b = _pick_block_b(B, D, x.dtype.itemsize)
    block_b = min(int(block_b), B)
    if block_b != B:
        block_b = max(8, (block_b // 8) * 8)
    if block_b >= B:
        block_b = B
    grid = (pl.cdiv(B, block_b),)

    # --- merge biases into one small f32 VMEM array (single DMA stream) ---
    H_max = max(H1, H2, 1)
    bias = jnp.zeros((3, H_max), jnp.float32)
    bias = bias.at[0, :H1].set(b1.reshape(-1).astype(jnp.float32))
    bias = bias.at[1, :H2].set(b2.reshape(-1).astype(jnp.float32))
    bias = bias.at[2, :1].set(b3.reshape(-1).astype(jnp.float32))

    # --- explicit VMEM budget (double-buffered x tile + resident weights) ---
    vmem_needed = (
        2 * _padded_bytes(block_b, D, x.dtype.itemsize)
        + 2 * (_padded_bytes(D, H1, w1.dtype.itemsize)
               + _padded_bytes(H1, H2, w2.dtype.itemsize)
               + _padded_bytes(H2, 1, w3.dtype.itemsize))
        + 2 * _padded_bytes(3, H_max, 4)
        + 2 * _padded_bytes(block_b, 1, x.dtype.itemsize)
    )
    vmem_limit = int(min(max(vmem_needed + (4 << 20), 16 << 20), 64 << 20))

    # --- cost hint for XLA's scheduler (bandwidth-bound custom call) ---
    flops = 2 * B * (D * H1 + H1 * H2 + H2)
    bytes_accessed = (B * D * x.dtype.itemsize
                      + D * H1 * w1.dtype.itemsize
                      + H1 * H2 * w2.dtype.itemsize
                      + H2 * 1 * w3.dtype.itemsize
                      + bias.size * 4
                      + B * x.dtype.itemsize)
    cost = pl.CostEstimate(flops=flops, transcendentals=0,
                           bytes_accessed=bytes_accessed)

    out = pl.pallas_call(
        _make_kernel(H1, H2),
        out_shape=jax.ShapeDtypeStruct((B, 1), x.dtype),
        grid=grid,
        in_specs=[
            pl.BlockSpec((block_b, D), lambda i: (i, 0)),    # x: tiled over batch
            pl.BlockSpec((D, H1), lambda i: (0, 0)),         # W1: resident
            pl.BlockSpec((H1, H2), lambda i: (0, 0)),        # W2: resident
            pl.BlockSpec((H2, 1), lambda i: (0, 0)),         # W3: resident
            pl.BlockSpec((3, H_max), lambda i: (0, 0)),      # merged biases: resident
        ],
        out_specs=pl.BlockSpec((block_b, 1), lambda i: (i, 0)),
        compiler_params=pltpu.CompilerParams(
            dimension_semantics=("parallel",),
            vmem_limit_bytes=vmem_limit,
        ),
        cost_estimate=cost,
    )(x, w1, w2, w3, bias)

    return out[:, 0]                                         # squeeze_output=True


def init_params(key, in_size, hid_sizes):
    """Deterministic Linear-layer init (Kaiming-uniform-ish, like torch default)."""
    sizes = [in_size, *hid_sizes, 1]
    params = []
    for i in range(len(sizes) - 1):
        fan_in, fan_out = sizes[i], sizes[i + 1]
        key, kw, kb = jax.random.split(key, 3)
        bound = 1.0 / jnp.sqrt(fan_in)
        # stored as (in, out) so the kernel does x @ W + b
        w = jax.random.uniform(kw, (fan_in, fan_out), jnp.float32, -bound, bound)
        b = jax.random.uniform(kb, (1, fan_out), jnp.float32, -bound, bound)
        params.extend([w, b])
    return tuple(params)


def _reference(state, params):
    w1, b1, w2, b2, w3, b3 = params
    x = state.reshape(state.shape[0], -1).astype(jnp.float32)
    h = jnp.maximum(x @ w1 + b1, 0.0)
    h = jnp.maximum(h @ w2 + b2, 0.0)
    return (h @ w3 + b3)[:, 0]


if __name__ == "__main__":
    key = jax.random.PRNGKey(0)
    k_obs, k_par = jax.random.split(key)

    # observation_space ~ Box(shape=(4, 16, 16)) -> flattened obs dim = 1024
    obs_shape = (4, 16, 16)
    in_size = math.prod(obs_shape)
    hid_sizes = (32, 32)
    params = init_params(k_par, in_size, hid_sizes)

    # 1) f32, small batch (single block covers the batch).
    B = 8
    state = jax.random.normal(k_obs, (B, *obs_shape), jnp.float32)
    out = jax.block_until_ready(basic_potential_mlp(state, params))
    ref = _reference(state, params)
    assert out.shape == (B,)
    assert jnp.allclose(out, ref, atol=1e-5, rtol=1e-5)

    # 2) f32, multi-step pipelined grid with a ragged tail (B % block_b != 0).
    B2 = 20
    state2 = jax.random.normal(jax.random.PRNGKey(1), (B2, *obs_shape), jnp.float32)
    out2 = jax.block_until_ready(basic_potential_mlp(state2, params, block_b=8))
    ref2 = _reference(state2, params)
    assert out2.shape == (B2,)
    assert jnp.allclose(out2, ref2, atol=1e-5, rtol=1e-5)

    # 3) bf16 x / weights (halves the dominant HBM byte stream), f32 accumulate.
    w1, b1, w2, b2, w3, b3 = params
    params_bf16 = (w1.astype(jnp.bfloat16), b1,
                   w2.astype(jnp.bfloat16), b2,
                   w3.astype(jnp.bfloat16), b3)
    state_bf16 = state.astype(jnp.bfloat16)
    out3 = jax.block_until_ready(basic_potential_mlp(state_bf16, params_bf16))
    ref3 = _reference(
        state_bf16.astype(jnp.float32),
        (w1.astype(jnp.bfloat16).astype(jnp.float32), b1,
         w2.astype(jnp.bfloat16).astype(jnp.float32), b2,
         w3.astype(jnp.bfloat16).astype(jnp.float32), b3))
    assert out3.shape == (B,)
    assert jnp.allclose(out3.astype(jnp.float32), ref3, atol=5e-2, rtol=5e-2)

    print("KERNEL_OK")
</pallas_src>

<mosaic_0001>
module attributes {stable_mosaic.version = 11 : i64} {
  func.func @_mlp_kernel(%arg0: i32, %arg1: memref<8x1024xf32, #tpu.memory_space<vmem>>, %arg2: memref<1024x32xf32, #tpu.memory_space<vmem>>, %arg3: memref<32x32xf32, #tpu.memory_space<vmem>>, %arg4: memref<32x1xf32, #tpu.memory_space<vmem>>, %arg5: memref<3x32xf32, #tpu.memory_space<vmem>>, %arg6: memref<8x1xf32, #tpu.memory_space<vmem>>) attributes {dimension_semantics = [#tpu.dimension_semantics<parallel>], iteration_bounds = array<i64: 1>, scalar_prefetch = 0 : i64, scratch_operands = 0 : i64, tpu.core_type = #tpu.core_type<tc>, window_params = [{transform_indices = @transform_0, window_bounds = array<i64: 8, 1024>}, {pipeline_mode = #tpu.pipeline_mode<synchronous>, transform_indices = @transform_1, window_bounds = array<i64: 1024, 32>}, {pipeline_mode = #tpu.pipeline_mode<synchronous>, transform_indices = @transform_2, window_bounds = array<i64: 32, 32>}, {pipeline_mode = #tpu.pipeline_mode<synchronous>, transform_indices = @transform_3, window_bounds = array<i64: 32, 1>}, {pipeline_mode = #tpu.pipeline_mode<synchronous>, transform_indices = @transform_4, window_bounds = array<i64: 3, 32>}, {transform_indices = @transform_5, window_bounds = array<i64: 8, 1>}]} {
    %c0 = arith.constant 0 : index
    %c0_0 = arith.constant 0 : index
    %0 = vector.load %arg5[%c0, %c0_0] : memref<3x32xf32, #tpu.memory_space<vmem>>, vector<3x32xf32>
    %c0_1 = arith.constant 0 : index
    %c0_2 = arith.constant 0 : index
    %1 = vector.load %arg1[%c0_1, %c0_2] : memref<8x1024xf32, #tpu.memory_space<vmem>>, vector<8x1024xf32>
    %c0_3 = arith.constant 0 : index
    %c0_4 = arith.constant 0 : index
    %2 = vector.load %arg2[%c0_3, %c0_4] : memref<1024x32xf32, #tpu.memory_space<vmem>>, vector<1024x32xf32>
    %cst = arith.constant dense<0.000000e+00> : vector<8x32xf32>
    %3 = tpu.matmul %1, %2, %cst {dimension_numbers = #tpu.dot_dimension_numbers<[1], [0], [0], [1], [0, 0, 1, 1], [], []>} : vector<8x1024xf32>, vector<1024x32xf32>, vector<8x32xf32> -> vector<8x32xf32>
    %4 = vector.extract_strided_slice %0 {offsets = [0, 0], sizes = [1, 32], strides = [1, 1]} : vector<3x32xf32> to vector<1x32xf32>
    %5 = vector.broadcast %4 : vector<1x32xf32> to vector<8x32xf32>
    %6 = arith.addf %3, %5 : vector<8x32xf32>
    %cst_5 = arith.constant 0.000000e+00 : f32
    %7 = vector.broadcast %cst_5 : f32 to vector<8x32xf32>
    %8 = arith.maximumf %6, %7 : vector<8x32xf32>
    %c0_6 = arith.constant 0 : index
    %c0_7 = arith.constant 0 : index
    %9 = vector.load %arg3[%c0_6, %c0_7] : memref<32x32xf32, #tpu.memory_space<vmem>>, vector<32x32xf32>
    %cst_8 = arith.constant dense<0.000000e+00> : vector<8x32xf32>
    %10 = tpu.matmul %8, %9, %cst_8 {dimension_numbers = #tpu.dot_dimension_numbers<[1], [0], [0], [1], [0, 0, 1, 1], [], []>} : vector<8x32xf32>, vector<32x32xf32>, vector<8x32xf32> -> vector<8x32xf32>
    %11 = vector.extract_strided_slice %0 {offsets = [1, 0], sizes = [1, 32], strides = [1, 1]} : vector<3x32xf32> to vector<1x32xf32>
    %12 = vector.broadcast %11 : vector<1x32xf32> to vector<8x32xf32>
    %13 = arith.addf %10, %12 : vector<8x32xf32>
    %cst_9 = arith.constant 0.000000e+00 : f32
    %14 = vector.broadcast %cst_9 : f32 to vector<8x32xf32>
    %15 = arith.maximumf %13, %14 : vector<8x32xf32>
    %c0_10 = arith.constant 0 : index
    %c0_11 = arith.constant 0 : index
    %16 = vector.load %arg4[%c0_10, %c0_11] : memref<32x1xf32, #tpu.memory_space<vmem>>, vector<32x1xf32>
    %cst_12 = arith.constant dense<0.000000e+00> : vector<8x1xf32>
    %17 = tpu.matmul %15, %16, %cst_12 {dimension_numbers = #tpu.dot_dimension_numbers<[1], [0], [0], [1], [0, 0, 1, 1], [], []>} : vector<8x32xf32>, vector<32x1xf32>, vector<8x1xf32> -> vector<8x1xf32>
    %18 = vector.extract_strided_slice %0 {offsets = [2, 0], sizes = [1, 1], strides = [1, 1]} : vector<3x32xf32> to vector<1x1xf32>
    %19 = vector.broadcast %18 : vector<1x1xf32> to vector<8x1xf32>
    %20 = arith.addf %17, %19 : vector<8x1xf32>
    %c0_13 = arith.constant 0 : index
    %c0_14 = arith.constant 0 : index
    %21 = vector.load %arg6[%c0_13, %c0_14] : memref<8x1xf32, #tpu.memory_space<vmem>>, vector<8x1xf32>
    tpu.vector_store %arg6[%c0_13, %c0_14], %20 {strides = array<i32>} : memref<8x1xf32, #tpu.memory_space<vmem>>, vector<8x1xf32>,
    return
  }
  func.func @transform_0(%arg0: i32) -> (i32, i32) {
    %c0_i32 = arith.constant 0 : i32
    %c0_i32_0 = arith.constant 0 : i32
    return %arg0, %c0_i32 : i32, i32
  }
  func.func @transform_1(%arg0: i32) -> (i32, i32) {
    %c0_i32 = arith.constant 0 : i32
    %c0_i32_0 = arith.constant 0 : i32
    %c0_i32_1 = arith.constant 0 : i32
    return %c0_i32, %c0_i32_0 : i32, i32
  }
  func.func @transform_2(%arg0: i32) -> (i32, i32) {
    %c0_i32 = arith.constant 0 : i32
    %c0_i32_0 = arith.constant 0 : i32
    %c0_i32_1 = arith.constant 0 : i32
    return %c0_i32, %c0_i32_0 : i32, i32
  }
  func.func @transform_3(%arg0: i32) -> (i32, i32) {
    %c0_i32 = arith.constant 0 : i32
    %c0_i32_0 = arith.constant 0 : i32
    %c0_i32_1 = arith.constant 0 : i32
    return %c0_i32, %c0_i32_0 : i32, i32
  }
  func.func @transform_4(%arg0: i32) -> (i32, i32) {
    %c0_i32 = arith.constant 0 : i32
    %c0_i32_0 = arith.constant 0 : i32
    %c0_i32_1 = arith.constant 0 : i32
    return %c0_i32, %c0_i32_0 : i32, i32
  }
  func.func @transform_5(%arg0: i32) -> (i32, i32) {
    %c0_i32 = arith.constant 0 : i32
    %c0_i32_0 = arith.constant 0 : i32
    return %arg0, %c0_i32 : i32, i32
  }
}

</mosaic_0001>

<llo_original>
// kernel: tpu_custom_call.1
$region0: #{tpu_custom_call.1}
  #allocation0 [shape = 'u32[]', space=smem, size = 0x4, offset = 0x4, fixed_abs, tag = 'smem constant byte address 0x4 - core index']
  #allocation1 [shape = 'u32[72,128]{1,0:T(1,128)}', space=vmem, size = 0x9000, scoped, tag = 'internal scratch']
  %s0 = inlined_call_operand.vmem [shape: f32[8,1024], index: 0, kind: input, shape index: {}]
  %s1 = inlined_call_operand.vmem [shape: f32[1024,32], index: 1, kind: input, shape index: {}]
  %s2 = inlined_call_operand.vmem [shape: f32[32,32], index: 2, kind: input, shape index: {}]
  %s3 = inlined_call_operand.vmem [shape: f32[32,1], index: 3, kind: input, shape index: {}]
  %s4 = inlined_call_operand.vmem [shape: f32[3,32], index: 4, kind: input, shape index: {}]
  %s5 = inlined_call_operand.vmem [shape: f32[8,1], index: 5, kind: output, shape index: {}]
  %s6 = sld [smem:[#allocation0]]
  $region30: #{tpu_custom_call.1} parent=0
    _
  %s8 = ssub.s32 1, %s6
  %s9 = scalar_select 0, %s8, %s6
  // Predicated region
  $region2: #{tpu_custom_call.1} parent=0 // pred_check
    _
  $region3: #{tpu_custom_call.1} parent=0 // pred_check_branch
    %11 = sbr.rel (0) target = $region5
  $region4: #{tpu_custom_call.1} parent=0 // pred_region
    _
  $region5: #{tpu_custom_call.1} parent=0 // pred_fallthru
    _
  // Predicated region
  $region6: #{tpu_custom_call.1} parent=0 // pred_check
    _
  $region7: #{tpu_custom_call.1} parent=0 // pred_check_branch
    %13 = sbr.rel (0) target = $region9
  $region8: #{tpu_custom_call.1} parent=0 // pred_region
    _
  $region9: #{tpu_custom_call.1} parent=0 // pred_fallthru
    _
  // Predicated region
  $region10: #{tpu_custom_call.1} parent=0 // pred_check
    _
  $region11: #{tpu_custom_call.1} parent=0 // pred_check_branch
    %15 = sbr.rel (0) target = $region13
  $region12: #{tpu_custom_call.1} parent=0 // pred_region
    _
  $region13: #{tpu_custom_call.1} parent=0 // pred_fallthru
    _
  // Predicated region
  $region14: #{tpu_custom_call.1} parent=0 // pred_check
    _
  $region15: #{tpu_custom_call.1} parent=0 // pred_check_branch
    %17 = sbr.rel (0) target = $region17
  $region16: #{tpu_custom_call.1} parent=0 // pred_region
    _
  $region17: #{tpu_custom_call.1} parent=0 // pred_fallthru
    _
  // Predicated region
  $region18: #{tpu_custom_call.1} parent=0 // pred_check
    _
  $region19: #{tpu_custom_call.1} parent=0 // pred_check_branch
    %19 = sbr.rel (0) target = $region21
  $region20: #{tpu_custom_call.1} parent=0 // pred_region
    _
  $region21: #{tpu_custom_call.1} parent=0 // pred_fallthru
    _
  %v20 = vld [vmem:[%s4] sm:$0x7]
  %v21 = vld [vmem:[%s0] sm:$0xff]
  %v22 = vld [vmem:[%s0 + $0x8] sm:$0xff]
  %v23 = vld [vmem:[%s0 + $0x10] sm:$0xff]
  %v24 = vld [vmem:[%s0 + $0x18] sm:$0xff]
  %v25 = vld [vmem:[%s0 + $0x20] sm:$0xff]
  %v26 = vld [vmem:[%s0 + $0x28] sm:$0xff]
  %v27 = vld [vmem:[%s0 + $0x30] sm:$0xff]
  %v28 = vld [vmem:[%s0 + $0x38] sm:$0xff]
  %v29 = vld [vmem:[%s1] sm:$0xff]
  %v30 = vld [vmem:[%s1 + $0x8] sm:$0xff]
  %v31 = vld [vmem:[%s1 + $0x10] sm:$0xff]
  %v32 = vld [vmem:[%s1 + $0x18] sm:$0xff]
  %v33 = vld [vmem:[%s1 + $0x20] sm:$0xff]
  %v34 = vld [vmem:[%s1 + $0x28] sm:$0xff]
  %v35 = vld [vmem:[%s1 + $0x30] sm:$0xff]
  %v36 = vld [vmem:[%s1 + $0x38] sm:$0xff]
  %v37 = vld [vmem:[%s1 + $0x40] sm:$0xff]
  %v38 = vld [vmem:[%s1 + $0x48] sm:$0xff]
  %v39 = vld [vmem:[%s1 + $0x50] sm:$0xff]
  %v40 = vld [vmem:[%s1 + $0x58] sm:$0xff]
  %v41 = vld [vmem:[%s1 + $0x60] sm:$0xff]
  %v42 = vld [vmem:[%s1 + $0x68] sm:$0xff]
  %v43 = vld [vmem:[%s1 + $0x70] sm:$0xff]
  %v44 = vld [vmem:[%s1 + $0x78] sm:$0xff]
  %v45 = vld [vmem:[%s1 + $0x80] sm:$0xff]
  %v46 = vld [vmem:[%s1 + $0x88] sm:$0xff]
  %v47 = vld [vmem:[%s1 + $0x90] sm:$0xff]
  %v48 = vld [vmem:[%s1 + $0x98] sm:$0xff]
  %v49 = vld [vmem:[%s1 + $0xa0] sm:$0xff]
  %v50 = vld [vmem:[%s1 + $0xa8] sm:$0xff]
  %v51 = vld [vmem:[%s1 + $0xb0] sm:$0xff]
  %v52 = vld [vmem:[%s1 + $0xb8] sm:$0xff]
  %v53 = vld [vmem:[%s1 + $0xc0] sm:$0xff]
  %v54 = vld [vmem:[%s1 + $0xc8] sm:$0xff]
  %v55 = vld [vmem:[%s1 + $0xd0] sm:$0xff]
  %v56 = vld [vmem:[%s1 + $0xd8] sm:$0xff]
  %v57 = vld [vmem:[%s1 + $0xe0] sm:$0xff]
  %v58 = vld [vmem:[%s1 + $0xe8] sm:$0xff]
  %v59 = vld [vmem:[%s1 + $0xf0] sm:$0xff]
  %v60 = vld [vmem:[%s1 + $0xf8] sm:$0xff]
  %v61 = vld [vmem:[%s1 + $0x100] sm:$0xff]
  %v62 = vld [vmem:[%s1 + $0x108] sm:$0xff]
  %v63 = vld [vmem:[%s1 + $0x110] sm:$0xff]
  %v64 = vld [vmem:[%s1 + $0x118] sm:$0xff]
  %v65 = vld [vmem:[%s1 + $0x120] sm:$0xff]
  %v66 = vld [vmem:[%s1 + $0x128] sm:$0xff]
  %v67 = vld [vmem:[%s1 + $0x130] sm:$0xff]
  %v68 = vld [vmem:[%s1 + $0x138] sm:$0xff]
  %v69 = vld [vmem:[%s1 + $0x140] sm:$0xff]
  %v70 = vld [vmem:[%s1 + $0x148] sm:$0xff]
  %v71 = vld [vmem:[%s1 + $0x150] sm:$0xff]
  %v72 = vld [vmem:[%s1 + $0x158] sm:$0xff]
  %v73 = vld [vmem:[%s1 + $0x160] sm:$0xff]
  %v74 = vld [vmem:[%s1 + $0x168] sm:$0xff]
  %v75 = vld [vmem:[%s1 + $0x170] sm:$0xff]
  %v76 = vld [vmem:[%s1 + $0x178] sm:$0xff]
  %v77 = vld [vmem:[%s1 + $0x180] sm:$0xff]
  %v78 = vld [vmem:[%s1 + $0x188] sm:$0xff]
  %v79 = vld [vmem:[%s1 + $0x190] sm:$0xff]
  %v80 = vld [vmem:[%s1 + $0x198] sm:$0xff]
  %v81 = vld [vmem:[%s1 + $0x1a0] sm:$0xff]
  %v82 = vld [vmem:[%s1 + $0x1a8] sm:$0xff]
  %v83 = vld [vmem:[%s1 + $0x1b0] sm:$0xff]
  %v84 = vld [vmem:[%s1 + $0x1b8] sm:$0xff]
  %v85 = vld [vmem:[%s1 + $0x1c0] sm:$0xff]
  %v86 = vld [vmem:[%s1 + $0x1c8] sm:$0xff]
  %v87 = vld [vmem:[%s1 + $0x1d0] sm:$0xff]
  %v88 = vld [vmem:[%s1 + $0x1d8] sm:$0xff]
  %v89 = vld [vmem:[%s1 + $0x1e0] sm:$0xff]
  %v90 = vld [vmem:[%s1 + $0x1e8] sm:$0xff]
  %v91 = vld [vmem:[%s1 + $0x1f0] sm:$0xff]
  %v92 = vld [vmem:[%s1 + $0x1f8] sm:$0xff]
  %v93 = vld [vmem:[%s1 + $0x200] sm:$0xff]
  %v94 = vld [vmem:[%s1 + $0x208] sm:$0xff]
  %v95 = vld [vmem:[%s1 + $0x210] sm:$0xff]
  %v96 = vld [vmem:[%s1 + $0x218] sm:$0xff]
  %v97 = vld [vmem:[%s1 + $0x220] sm:$0xff]
  %v98 = vld [vmem:[%s1 + $0x228] sm:$0xff]
  %v99 = vld [vmem:[%s1 + $0x230] sm:$0xff]
  %v100 = vld [vmem:[%s1 + $0x238] sm:$0xff]
  %v101 = vld [vmem:[%s1 + $0x240] sm:$0xff]
  %v102 = vld [vmem:[%s1 + $0x248] sm:$0xff]
  %v103 = vld [vmem:[%s1 + $0x250] sm:$0xff]
  %v104 = vld [vmem:[%s1 + $0x258] sm:$0xff]
  %v105 = vld [vmem:[%s1 + $0x260] sm:$0xff]
  %v106 = vld [vmem:[%s1 + $0x268] sm:$0xff]
  %v107 = vld [vmem:[%s1 + $0x270] sm:$0xff]
  %v108 = vld [vmem:[%s1 + $0x278] sm:$0xff]
  %v109 = vld [vmem:[%s1 + $0x280] sm:$0xff]
  %v110 = vld [vmem:[%s1 + $0x288] sm:$0xff]
  %v111 = vld [vmem:[%s1 + $0x290] sm:$0xff]
  %v112 = vld [vmem:[%s1 + $0x298] sm:$0xff]
  %v113 = vld [vmem:[%s1 + $0x2a0] sm:$0xff]
  %v114 = vld [vmem:[%s1 + $0x2a8] sm:$0xff]
  %v115 = vld [vmem:[%s1 + $0x2b0] sm:$0xff]
  %v116 = vld [vmem:[%s1 + $0x2b8] sm:$0xff]
  %v117 = vld [vmem:[%s1 + $0x2c0] sm:$0xff]
  %v118 = vld [vmem:[%s1 + $0x2c8] sm:$0xff]
  %v119 = vld [vmem:[%s1 + $0x2d0] sm:$0xff]
  %v120 = vld [vmem:[%s1 + $0x2d8] sm:$0xff]
  %v121 = vld [vmem:[%s1 + $0x2e0] sm:$0xff]
  %v122 = vld [vmem:[%s1 + $0x2e8] sm:$0xff]
  %v123 = vld [vmem:[%s1 + $0x2f0] sm:$0xff]
  %v124 = vld [vmem:[%s1 + $0x2f8] sm:$0xff]
  %v125 = vld [vmem:[%s1 + $0x300] sm:$0xff]
  %v126 = vld [vmem:[%s1 + $0x308] sm:$0xff]
  %v127 = vld [vmem:[%s1 + $0x310] sm:$0xff]
  %v128 = vld [vmem:[%s1 + $0x318] sm:$0xff]
  %v129 = vld [vmem:[%s1 + $0x320] sm:$0xff]
  %v130 = vld [vmem:[%s1 + $0x328] sm:$0xff]
  %v131 = vld [vmem:[%s1 + $0x330] sm:$0xff]
  %v132 = vld [vmem:[%s1 + $0x338] sm:$0xff]
  %v133 = vld [vmem:[%s1 + $0x340] sm:$0xff]
  %v134 = vld [vmem:[%s1 + $0x348] sm:$0xff]
  %v135 = vld [vmem:[%s1 + $0x350] sm:$0xff]
  %v136 = vld [vmem:[%s1 + $0x358] sm:$0xff]
  %v137 = vld [vmem:[%s1 + $0x360] sm:$0xff]
  %v138 = vld [vmem:[%s1 + $0x368] sm:$0xff]
  %v139 = vld [vmem:[%s1 + $0x370] sm:$0xff]
  %v140 = vld [vmem:[%s1 + $0x378] sm:$0xff]
  %v141 = vld [vmem:[%s1 + $0x380] sm:$0xff]
  %v142 = vld [vmem:[%s1 + $0x388] sm:$0xff]
  %v143 = vld [vmem:[%s1 + $0x390] sm:$0xff]
  %v144 = vld [vmem:[%s1 + $0x398] sm:$0xff]
  %v145 = vld [vmem:[%s1 + $0x3a0] sm:$0xff]
  %v146 = vld [vmem:[%s1 + $0x3a8] sm:$0xff]
  %v147 = vld [vmem:[%s1 + $0x3b0] sm:$0xff]
  %v148 = vld [vmem:[%s1 + $0x3b8] sm:$0xff]
  %v149 = vld [vmem:[%s1 + $0x3c0] sm:$0xff]
  %v150 = vld [vmem:[%s1 + $0x3c8] sm:$0xff]
  %v151 = vld [vmem:[%s1 + $0x3d0] sm:$0xff]
  %v152 = vld [vmem:[%s1 + $0x3d8] sm:$0xff]
  %v153 = vld [vmem:[%s1 + $0x3e0] sm:$0xff]
  %v154 = vld [vmem:[%s1 + $0x3e8] sm:$0xff]
  %v155 = vld [vmem:[%s1 + $0x3f0] sm:$0xff]
  %v156 = vld [vmem:[%s1 + $0x3f8] sm:$0xff]
  %v157 = vperm.slane %v20, 0
  %158 = vmatpush.msra.mxu0 %v44
  %159 = vmatpush.msra.mxu0 %v43
  %160 = vmatpush.msra.mxu0 %v42
  %161 = vmatpush.msra.mxu0 %v41
  %162 = vmatpush.msra.mxu0 %v40
  %163 = vmatpush.msra.mxu0 %v39
  %164 = vmatpush.msra.mxu0 %v38
  %165 = vmatpush.msra.mxu0 %v37
  %166 = vmatpush.msra.mxu0 %v36
  %167 = vmatpush.msra.mxu0 %v35
  %168 = vmatpush.msra.mxu0 %v34
  %169 = vmatpush.msra.mxu0 %v33
  %170 = vmatpush.msra.mxu0 %v32
  %171 = vmatpush.msra.mxu0 %v31
  %172 = vmatpush.msra.mxu0 %v30
  %173 = vmatpush.msra.mxu0 %v29
  %174 = vmatmul.f32.gmra.mxu0 %v21
  %v175 = vpop.f32.mrf.mxu0
  %v176 = vadd.f32 %v157, %v175
  %177 = vdwg.mxu0
  %178 = vmatpush.msra.mxu0 %v60
  %179 = vmatpush.msra.mxu0 %v59
  %180 = vmatpush.msra.mxu0 %v58
  %181 = vmatpush.msra.mxu0 %v57
  %182 = vmatpush.msra.mxu0 %v56
  %183 = vmatpush.msra.mxu0 %v55
  %184 = vmatpush.msra.mxu0 %v54
  %185 = vmatpush.msra.mxu0 %v53
  %186 = vmatpush.msra.mxu0 %v52
  %187 = vmatpush.msra.mxu0 %v51
  %188 = vmatpush.msra.mxu0 %v50
  %189 = vmatpush.msra.mxu0 %v49
  %190 = vmatpush.msra.mxu0 %v48
  %191 = vmatpush.msra.mxu0 %v47
  %192 = vmatpush.msra.mxu0 %v46
  %193 = vmatpush.msra.mxu0 %v45
  %194 = vmatmul.f32.gmra.mxu0 %v22
  %v195 = vpop.f32.mrf.mxu0
  %v196 = vadd.f32 %v176, %v195
  %197 = vdwg.mxu0
  %198 = vmatpush.msra.mxu0 %v76
  %199 = vmatpush.msra.mxu0 %v75
  %200 = vmatpush.msra.mxu0 %v74
  %201 = vmatpush.msra.mxu0 %v73
  %202 = vmatpush.msra.mxu0 %v72
  %203 = vmatpush.msra.mxu0 %v71
  %204 = vmatpush.msra.mxu0 %v70
  %205 = vmatpush.msra.mxu0 %v69
  %206 = vmatpush.msra.mxu0 %v68
  %207 = vmatpush.msra.mxu0 %v67
  %208 = vmatpush.msra.mxu0 %v66
  %209 = vmatpush.msra.mxu0 %v65
  %210 = vmatpush.msra.mxu0 %v64
  %211 = vmatpush.msra.mxu0 %v63
  %212 = vmatpush.msra.mxu0 %v62
  %213 = vmatpush.msra.mxu0 %v61
  %214 = vmatmul.f32.gmra.mxu0 %v23
  %v215 = vpop.f32.mrf.mxu0
  %v216 = vadd.f32 %v196, %v215
  %217 = vdwg.mxu0
  %218 = vmatpush.msra.mxu0 %v92
  %219 = vmatpush.msra.mxu0 %v91
  %220 = vmatpush.msra.mxu0 %v90
  %221 = vmatpush.msra.mxu0 %v89
  %222 = vmatpush.msra.mxu0 %v88
  %223 = vmatpush.msra.mxu0 %v87
  %224 = vmatpush.msra.mxu0 %v86
  %225 = vmatpush.msra.mxu0 %v85
  %226 = vmatpush.msra.mxu0 %v84
  %227 = vmatpush.msra.mxu0 %v83
  %228 = vmatpush.msra.mxu0 %v82
  %229 = vmatpush.msra.mxu0 %v81
  %230 = vmatpush.msra.mxu0 %v80
  %231 = vmatpush.msra.mxu0 %v79
  %232 = vmatpush.msra.mxu0 %v78
  %233 = vmatpush.msra.mxu0 %v77
  %234 = vmatmul.f32.gmra.mxu0 %v24
  %v235 = vpop.f32.mrf.mxu0
  %v236 = vadd.f32 %v216, %v235
  %237 = vdwg.mxu0
  %238 = vmatpush.msra.mxu0 %v108
  %239 = vmatpush.msra.mxu0 %v107
  %240 = vmatpush.msra.mxu0 %v106
  %241 = vmatpush.msra.mxu0 %v105
  %242 = vmatpush.msra.mxu0 %v104
  %243 = vmatpush.msra.mxu0 %v103
  %244 = vmatpush.msra.mxu0 %v102
  %245 = vmatpush.msra.mxu0 %v101
  %246 = vmatpush.msra.mxu0 %v100
  %247 = vmatpush.msra.mxu0 %v99
  %248 = vmatpush.msra.mxu0 %v98
  %249 = vmatpush.msra.mxu0 %v97
  %250 = vmatpush.msra.mxu0 %v96
  %251 = vmatpush.msra.mxu0 %v95
  %252 = vmatpush.msra.mxu0 %v94
  %253 = vmatpush.msra.mxu0 %v93
  %254 = vmatmul.f32.gmra.mxu0 %v25
  %v255 = vpop.f32.mrf.mxu0
  %v256 = vadd.f32 %v236, %v255
  %257 = vdwg.mxu0
  %258 = vmatpush.msra.mxu0 %v124
  %259 = vmatpush.msra.mxu0 %v123
  %260 = vmatpush.msra.mxu0 %v122
  %261 = vmatpush.msra.mxu0 %v121
  %262 = vmatpush.msra.mxu0 %v120
  %263 = vmatpush.msra.mxu0 %v119
  %264 = vmatpush.msra.mxu0 %v118
  %265 = vmatpush.msra.mxu0 %v117
  %266 = vmatpush.msra.mxu0 %v116
  %267 = vmatpush.msra.mxu0 %v115
  %268 = vmatpush.msra.mxu0 %v114
  %269 = vmatpush.msra.mxu0 %v113
  %270 = vmatpush.msra.mxu0 %v112
  %271 = vmatpush.msra.mxu0 %v111
  %272 = vmatpush.msra.mxu0 %v110
  %273 = vmatpush.msra.mxu0 %v109
  %274 = vmatmul.f32.gmra.mxu0 %v26
  %v275 = vpop.f32.mrf.mxu0
  %v276 = vadd.f32 %v256, %v275
  %277 = vdwg.mxu0
  %278 = vmatpush.msra.mxu0 %v140
  %279 = vmatpush.msra.mxu0 %v139
  %280 = vmatpush.msra.mxu0 %v138
  %281 = vmatpush.msra.mxu0 %v137
  %282 = vmatpush.msra.mxu0 %v136
  %283 = vmatpush.msra.mxu0 %v135
  %284 = vmatpush.msra.mxu0 %v134
  %285 = vmatpush.msra.mxu0 %v133
  %286 = vmatpush.msra.mxu0 %v132
  %287 = vmatpush.msra.mxu0 %v131
  %288 = vmatpush.msra.mxu0 %v130
  %289 = vmatpush.msra.mxu0 %v129
  %290 = vmatpush.msra.mxu0 %v128
  %291 = vmatpush.msra.mxu0 %v127
  %292 = vmatpush.msra.mxu0 %v126
  %293 = vmatpush.msra.mxu0 %v125
  %294 = vmatmul.f32.gmra.mxu0 %v27
  %v295 = vpop.f32.mrf.mxu0
  %v296 = vadd.f32 %v276, %v295
  %297 = vdwg.mxu0
  %298 = vmatpush.msra.mxu0 %v156
  %299 = vmatpush.msra.mxu0 %v155
  %300 = vmatpush.msra.mxu0 %v154
  %301 = vmatpush.msra.mxu0 %v153
  %302 = vmatpush.msra.mxu0 %v152
  %303 = vmatpush.msra.mxu0 %v151
  %304 = vmatpush.msra.mxu0 %v150
  %305 = vmatpush.msra.mxu0 %v149
  %306 = vmatpush.msra.mxu0 %v148
  %307 = vmatpush.msra.mxu0 %v147
  %308 = vmatpush.msra.mxu0 %v146
  %309 = vmatpush.msra.mxu0 %v145
  %310 = vmatpush.msra.mxu0 %v144
  %311 = vmatpush.msra.mxu0 %v143
  %312 = vmatpush.msra.mxu0 %v142
  %313 = vmatpush.msra.mxu0 %v141
  %314 = vmatmul.f32.gmra.mxu0 %v28
  %v315 = vpop.f32.mrf.mxu0
  %v316 = vadd.f32 %v296, %v315
  %317 = vdwg.mxu0
  %v318 = vmax.f32 %v316, 0.0
  %v319 = vld [vmem:[%s2] sm:$0xff]
  %v320 = vld [vmem:[%s2 + $0x8] sm:$0xff]
  %v321 = vld [vmem:[%s2 + $0x10] sm:$0xff]
  %v322 = vld [vmem:[%s2 + $0x18] sm:$0xff]
  %v323 = vperm.slane %v20, 1
  %vm324 = vcmask 261120
  %v326 = vsel %vm324, %v318, 0
  %328 = vmatpush.msra.mxu0 0.0
  %329 = vmatpush.msra.mxu0 0.0
  %330 = vmatpush.msra.mxu0 0.0
  %331 = vmatpush.msra.mxu0 0.0
  %332 = vmatpush.msra.mxu0 0.0
  %333 = vmatpush.msra.mxu0 0.0
  %334 = vmatpush.msra.mxu0 0.0
  %335 = vmatpush.msra.mxu0 0.0
  %336 = vmatpush.msra.mxu0 0.0
  %337 = vmatpush.msra.mxu0 0.0
  %338 = vmatpush.msra.mxu0 0.0
  %339 = vmatpush.msra.mxu0 0.0
  %340 = vmatpush.msra.mxu0 %v322
  %341 = vmatpush.msra.mxu0 %v321
  %342 = vmatpush.msra.mxu0 %v320
  %343 = vmatpush.msra.mxu0 %v319
  %344 = vmatmul.f32.gmra.mxu0 %v326
  %v345 = vpop.f32.mrf.mxu0
  %v346 = vadd.f32 %v323, %v345
  %347 = vdwg.mxu0
  %v348 = vmax.f32 %v346, 0.0
  %v349 = vld [vmem:[%s3] sm:$0xff]
  %v350 = vld [vmem:[%s3 + $0x8] sm:$0xff]
  %v351 = vld [vmem:[%s3 + $0x10] sm:$0xff]
  %v352 = vld [vmem:[%s3 + $0x18] sm:$0xff]
  %v353 = vperm.slane %v20, 2
  %v355 = vsel %vm324, %v348, 0
  %357 = vmatpush.msra.mxu0 0.0
  %358 = vmatpush.msra.mxu0 0.0
  %359 = vmatpush.msra.mxu0 0.0
  %360 = vmatpush.msra.mxu0 0.0
  %361 = vmatpush.msra.mxu0 0.0
  %362 = vmatpush.msra.mxu0 0.0
  %363 = vmatpush.msra.mxu0 0.0
  %364 = vmatpush.msra.mxu0 0.0
  %365 = vmatpush.msra.mxu0 0.0
  %366 = vmatpush.msra.mxu0 0.0
  %367 = vmatpush.msra.mxu0 0.0
  %368 = vmatpush.msra.mxu0 0.0
  %369 = vmatpush.msra.mxu0 %v352
  %370 = vmatpush.msra.mxu0 %v351
  %371 = vmatpush.msra.mxu0 %v350
  %372 = vmatpush.msra.mxu0 %v349
  %373 = vmatmul.f32.gmra.mxu0 %v355
  %v374 = vpop.f32.mrf.mxu0
  %v375 = vadd.f32 %v353, %v374
  %376 = vdwg.mxu0
  %vm377 = vcmask 7168
  %378 = vst.msk [vmem:[%s5] sm:$0xff] %vm377, %v375
  // Predicated region
  $region22: #{tpu_custom_call.1} parent=0 // pred_check
    _
  $region23: #{tpu_custom_call.1} parent=0 // pred_check_branch
    %380 = sbr.rel (0) target = $region25
  $region24: #{tpu_custom_call.1} parent=0 // pred_region
    _
  $region25: #{tpu_custom_call.1} parent=0 // pred_fallthru
    _
  // Predicated region
  $region26: #{tpu_custom_call.1} parent=0 // pred_check
    _
  $region27: #{tpu_custom_call.1} parent=0 // pred_check_branch
    %382 = sbr.rel (0) target = $region29
  $region28: #{tpu_custom_call.1} parent=0 // pred_region
    _
  $region29: #{tpu_custom_call.1} parent=0 // pred_fallthru
    _

</llo_original>
